<compile_context>
chip_gen: v7x
topology: tpu7x:2x2x1
jax: 0.10.0
libtpu: 0.0.40
codegen_flags: <defaults>
</compile_context>

<pallas_src>
import functools

import jax
import jax.numpy as jnp
from jax.experimental import pallas as pl
from jax.experimental.pallas import tpu as pltpu


# ---------------------------------------------------------------------------
# Fused branch kernel: num_layers residual 1x1x1 convs + final concat-conv.
# ---------------------------------------------------------------------------
def _branch_kernel(wl_ref, bl_ref, wf_ref, bf_ref, x_ref, o_ref, *,
                   num_layers, c):
    # x_ref block: (1, C, TR, LW) -- one batch element, one spatial tile.
    # Evolving activation kept as one (TR, LW) f32 array per channel.
    cur = [x_ref[0, ci].astype(jnp.float32) for ci in range(c)]

    # Per-layer 1x1x1 conv + fused residual add (scalar-broadcast FMAs, VPU).
    for l in range(num_layers):
        new = []
        for co in range(c):
            acc = bl_ref[l * c + co]                          # scalar bias
            for ci in range(c):
                acc = acc + wl_ref[(l * c + co) * c + ci] * cur[ci]
            new.append(cur[co] + acc)                         # residual add
        cur = new

    # Final Conv3d(2C -> C, k=1) with the channel concat folded:
    #   out = W[:, :C] @ cur + W[:, C:] @ x0 + b
    for co in range(c):
        acc = bf_ref[co]
        for ci in range(c):
            acc = acc + wf_ref[co * 2 * c + ci] * cur[ci]
            acc = acc + (wf_ref[co * 2 * c + c + ci]
                         * x_ref[0, ci].astype(jnp.float32))
        o_ref[0, co] = acc.astype(o_ref.dtype)


# ---------------------------------------------------------------------------
# Tiling helpers
# ---------------------------------------------------------------------------
def _split_spatial(s):
    """Factor the flattened spatial dim into (sublane rows, lanes)."""
    if s % 128 == 0:
        return s // 128, 128
    # TODO(synk): spatial sizes that are not a multiple of 128 fall back to a
    # single lane-major row (correct, but only 1 of 8 sublanes is used).
    return 1, s


def _pick_rows(r, max_rows=512):
    """Row tile: full R if small, else the largest multiple-of-8 divisor."""
    if r <= max_rows:
        return r
    t = max_rows - (max_rows % 8)
    while t >= 8:
        if r % t == 0:
            return t
        t -= 8
    return r


# ---------------------------------------------------------------------------
# One branch: residual-conv stack + final concat-conv, fused.
# ---------------------------------------------------------------------------
def _branch_forward(x, w_layers, b_layers, w_final, b_final, max_rows=512):
    """x: (N, C, D, H, W); w_layers: (L, C, C); b_layers: (L, C);
    w_final: (C, 2C); b_final: (C,).  Returns (N, C, D, H, W)."""
    N, C, D, H, W = x.shape
    S = D * H * W
    L = int(w_layers.shape[0])
    assert w_final.shape == (C, 2 * C)

    R, LW = _split_spatial(S)
    TR = _pick_rows(R, max_rows)
    x4 = x.reshape(N, C, R, LW)                 # contiguous split -> free

    wl = w_layers.reshape(-1).astype(jnp.float32)   # (L*C*C,)
    bl = b_layers.reshape(-1).astype(jnp.float32)   # (L*C,)
    wf = w_final.reshape(-1).astype(jnp.float32)    # (C*2C,)
    bf = b_final.reshape(-1).astype(jnp.float32)    # (C,)

    grid = (N, R // TR)
    kernel = functools.partial(_branch_kernel, num_layers=L, c=C)
    smem_spec = pl.BlockSpec(memory_space=pltpu.MemorySpace.SMEM)

    out4 = pl.pallas_call(
        kernel,
        out_shape=jax.ShapeDtypeStruct((N, C, R, LW), x.dtype),
        grid_spec=pltpu.PrefetchScalarGridSpec(
            num_scalar_prefetch=0,
            grid=grid,
            in_specs=[
                smem_spec,                                    # layer weights
                smem_spec,                                    # layer biases
                smem_spec,                                    # final weights
                smem_spec,                                    # final bias
                pl.BlockSpec((1, C, TR, LW), lambda n, s: (n, 0, s, 0)),
            ],
            out_specs=pl.BlockSpec((1, C, TR, LW), lambda n, s: (n, 0, s, 0)),
        ),
        compiler_params=pltpu.CompilerParams(
            dimension_semantics=("parallel", "parallel")),
    )(wl, bl, wf, bf, x4)

    return out4.reshape(N, C, D, H, W)


# ---------------------------------------------------------------------------
# Pure-JAX reference (for a correctness check of the fused kernel).
# ---------------------------------------------------------------------------
def _branch_reference(x, w_layers, b_layers, w_final, b_final):
    cur = x
    for l in range(w_layers.shape[0]):
        conv = (jnp.einsum('oc,ncdhw->nodhw', w_layers[l], cur)
                + b_layers[l][None, :, None, None, None])
        cur = cur + conv
    cat = jnp.concatenate([cur, x], axis=1)
    return (jnp.einsum('oc,ncdhw->nodhw', w_final, cat)
            + b_final[None, :, None, None, None])


# ---------------------------------------------------------------------------
# Parameter construction (deterministic, synthetic)
# ---------------------------------------------------------------------------
def make_params(num_features_img, num_features_kspace, num_layers, key):
    k = jax.random.split(key, 8)
    return dict(
        w_img_layers=0.1 * jax.random.normal(
            k[0], (num_layers, num_features_img, num_features_img), jnp.float32),
        b_img_layers=0.01 * jax.random.normal(
            k[1], (num_layers, num_features_img), jnp.float32),
        w_k_layers=0.1 * jax.random.normal(
            k[2], (num_layers, num_features_kspace, num_features_kspace),
            jnp.float32),
        b_k_layers=0.01 * jax.random.normal(
            k[3], (num_layers, num_features_kspace), jnp.float32),
        # conv1d_img: Conv3d(2*F -> F, k=1); weight squeezed to (Cout, 2Cin).
        w_conv1d_img=0.1 * jax.random.normal(
            k[4], (num_features_img, 2 * num_features_img), jnp.float32),
        b_conv1d_img=0.01 * jax.random.normal(
            k[5], (num_features_img,), jnp.float32),
        w_conv1d_kspace=0.1 * jax.random.normal(
            k[6], (num_features_kspace, 2 * num_features_kspace), jnp.float32),
        b_conv1d_kspace=0.01 * jax.random.normal(
            k[7], (num_features_kspace,), jnp.float32),
    )


# ---------------------------------------------------------------------------
# ResidualInterlacer forward
# ---------------------------------------------------------------------------
def residual_interlacer_forward(params, x, hamming_grid, sense, perm,
                                phase_coil, homCorr):
    # TODO(synk): the Interlacer sub-module body is not present in the provided
    # src/model.py; a deterministic per-branch 1x1x1-conv stand-in (same channel
    # counts, residual add fused in-kernel) is used instead, so hamming_grid /
    # sense / perm / phase_coil / homCorr are unused.
    inputs_img, inputs_kspace = x
    outputs_img = _branch_forward(
        inputs_img, params["w_img_layers"], params["b_img_layers"],
        params["w_conv1d_img"], params["b_conv1d_img"])
    outputs_kspace = _branch_forward(
        inputs_kspace, params["w_k_layers"], params["b_k_layers"],
        params["w_conv1d_kspace"], params["b_conv1d_kspace"])
    return outputs_img, outputs_kspace


if __name__ == "__main__":
    # Small shapes consistent with the module's 5-D (N, C, D, H, W) Conv3d inputs.
    N, F_img, F_k, D, H, W = 2, 4, 4, 8, 8, 8
    num_layers = 2

    key = jax.random.PRNGKey(0)
    k_img, k_ksp, k_par = jax.random.split(key, 3)

    inputs_img = jax.random.normal(k_img, (N, F_img, D, H, W), jnp.float32)
    inputs_kspace = jax.random.normal(k_ksp, (N, F_k, D, H, W), jnp.float32)

    # Auxiliary forward args (consumed only by the Interlacer layers; unused by
    # the stand-in — see TODO above).
    hamming_grid = jnp.ones((D, H, W), jnp.float32)
    sense = jnp.ones((N, 1, D, H, W), jnp.float32)
    perm = jnp.arange(D, dtype=jnp.int32)
    phase_coil = jnp.ones((N, 1, D, H, W), jnp.float32)
    homCorr = jnp.ones((N, 1, D, H, W), jnp.float32)

    params = make_params(F_img, F_k, num_layers, k_par)

    out_img, out_kspace = residual_interlacer_forward(
        params, (inputs_img, inputs_kspace),
        hamming_grid, sense, perm, phase_coil, homCorr)
    jax.block_until_ready((out_img, out_kspace))

    assert out_img.shape == (N, F_img, D, H, W)
    assert out_kspace.shape == (N, F_k, D, H, W)

    # Correctness check against a pure-JAX reference of the same math.
    ref_img = _branch_reference(inputs_img, params["w_img_layers"],
                                params["b_img_layers"],
                                params["w_conv1d_img"], params["b_conv1d_img"])
    ref_k = _branch_reference(inputs_kspace, params["w_k_layers"],
                              params["b_k_layers"],
                              params["w_conv1d_kspace"],
                              params["b_conv1d_kspace"])
    assert jnp.allclose(out_img, ref_img, rtol=1e-4, atol=1e-4)
    assert jnp.allclose(out_kspace, ref_k, rtol=1e-4, atol=1e-4)

    print("KERNEL_OK")
</pallas_src>

<mosaic_0001>
module attributes {stable_mosaic.version = 11 : i64} {
  func.func @_branch_kernel(%arg0: i32, %arg1: i32, %arg2: memref<32xf32, #tpu.memory_space<smem>>, %arg3: memref<8xf32, #tpu.memory_space<smem>>, %arg4: memref<32xf32, #tpu.memory_space<smem>>, %arg5: memref<4xf32, #tpu.memory_space<smem>>, %arg6: memref<1x4x4x128xf32, #tpu.memory_space<vmem>>, %arg7: memref<1x4x4x128xf32, #tpu.memory_space<vmem>>) attributes {dimension_semantics = [#tpu.dimension_semantics<parallel>, #tpu.dimension_semantics<parallel>], iteration_bounds = array<i64: 2, 1>, scalar_prefetch = 0 : i64, scratch_operands = 0 : i64, tpu.core_type = #tpu.core_type<tc>, window_params = [{transform_indices = @transform_0, window_bounds = array<i64: 32>}, {transform_indices = @transform_1, window_bounds = array<i64: 8>}, {transform_indices = @transform_2, window_bounds = array<i64: 32>}, {transform_indices = @transform_3, window_bounds = array<i64: 4>}, {transform_indices = @transform_4, window_bounds = array<i64: 1, 4, 4, 128>}, {transform_indices = @transform_5, window_bounds = array<i64: 1, 4, 4, 128>}]} {
    %c0 = arith.constant 0 : index
    %c0_0 = arith.constant 0 : index
    %c0_1 = arith.constant 0 : index
    %c0_2 = arith.constant 0 : index
    %0 = vector.load %arg6[%c0, %c0_0, %c0_1, %c0_2] : memref<1x4x4x128xf32, #tpu.memory_space<vmem>>, vector<1x1x4x128xf32>
    %1 = vector.shape_cast %0 : vector<1x1x4x128xf32> to vector<4x128xf32>
    %c0_3 = arith.constant 0 : index
    %c1 = arith.constant 1 : index
    %c0_4 = arith.constant 0 : index
    %c0_5 = arith.constant 0 : index
    %2 = vector.load %arg6[%c0_3, %c1, %c0_4, %c0_5] : memref<1x4x4x128xf32, #tpu.memory_space<vmem>>, vector<1x1x4x128xf32>
    %3 = vector.shape_cast %2 : vector<1x1x4x128xf32> to vector<4x128xf32>
    %c0_6 = arith.constant 0 : index
    %c2 = arith.constant 2 : index
    %c0_7 = arith.constant 0 : index
    %c0_8 = arith.constant 0 : index
    %4 = vector.load %arg6[%c0_6, %c2, %c0_7, %c0_8] : memref<1x4x4x128xf32, #tpu.memory_space<vmem>>, vector<1x1x4x128xf32>
    %5 = vector.shape_cast %4 : vector<1x1x4x128xf32> to vector<4x128xf32>
    %c0_9 = arith.constant 0 : index
    %c3 = arith.constant 3 : index
    %c0_10 = arith.constant 0 : index
    %c0_11 = arith.constant 0 : index
    %6 = vector.load %arg6[%c0_9, %c3, %c0_10, %c0_11] : memref<1x4x4x128xf32, #tpu.memory_space<vmem>>, vector<1x1x4x128xf32>
    %7 = vector.shape_cast %6 : vector<1x1x4x128xf32> to vector<4x128xf32>
    %c0_12 = arith.constant 0 : index
    %8 = memref.load %arg3[%c0_12] : memref<8xf32, #tpu.memory_space<smem>>
    %c0_13 = arith.constant 0 : index
    %9 = memref.load %arg2[%c0_13] : memref<32xf32, #tpu.memory_space<smem>>
    %10 = vector.broadcast %9 : f32 to vector<4x128xf32>
    %11 = arith.mulf %10, %1 : vector<4x128xf32>
    %12 = vector.broadcast %8 : f32 to vector<4x128xf32>
    %13 = arith.addf %12, %11 : vector<4x128xf32>
    %c1_14 = arith.constant 1 : index
    %14 = memref.load %arg2[%c1_14] : memref<32xf32, #tpu.memory_space<smem>>
    %15 = vector.broadcast %14 : f32 to vector<4x128xf32>
    %16 = arith.mulf %15, %3 : vector<4x128xf32>
    %17 = arith.addf %13, %16 : vector<4x128xf32>
    %c2_15 = arith.constant 2 : index
    %18 = memref.load %arg2[%c2_15] : memref<32xf32, #tpu.memory_space<smem>>
    %19 = vector.broadcast %18 : f32 to vector<4x128xf32>
    %20 = arith.mulf %19, %5 : vector<4x128xf32>
    %21 = arith.addf %17, %20 : vector<4x128xf32>
    %c3_16 = arith.constant 3 : index
    %22 = memref.load %arg2[%c3_16] : memref<32xf32, #tpu.memory_space<smem>>
    %23 = vector.broadcast %22 : f32 to vector<4x128xf32>
    %24 = arith.mulf %23, %7 : vector<4x128xf32>
    %25 = arith.addf %21, %24 : vector<4x128xf32>
    %26 = arith.addf %1, %25 : vector<4x128xf32>
    %c1_17 = arith.constant 1 : index
    %27 = memref.load %arg3[%c1_17] : memref<8xf32, #tpu.memory_space<smem>>
    %c4 = arith.constant 4 : index
    %28 = memref.load %arg2[%c4] : memref<32xf32, #tpu.memory_space<smem>>
    %29 = vector.broadcast %28 : f32 to vector<4x128xf32>
    %30 = arith.mulf %29, %1 : vector<4x128xf32>
    %31 = vector.broadcast %27 : f32 to vector<4x128xf32>
    %32 = arith.addf %31, %30 : vector<4x128xf32>
    %c5 = arith.constant 5 : index
    %33 = memref.load %arg2[%c5] : memref<32xf32, #tpu.memory_space<smem>>
    %34 = vector.broadcast %33 : f32 to vector<4x128xf32>
    %35 = arith.mulf %34, %3 : vector<4x128xf32>
    %36 = arith.addf %32, %35 : vector<4x128xf32>
    %c6 = arith.constant 6 : index
    %37 = memref.load %arg2[%c6] : memref<32xf32, #tpu.memory_space<smem>>
    %38 = vector.broadcast %37 : f32 to vector<4x128xf32>
    %39 = arith.mulf %38, %5 : vector<4x128xf32>
    %40 = arith.addf %36, %39 : vector<4x128xf32>
    %c7 = arith.constant 7 : index
    %41 = memref.load %arg2[%c7] : memref<32xf32, #tpu.memory_space<smem>>
    %42 = vector.broadcast %41 : f32 to vector<4x128xf32>
    %43 = arith.mulf %42, %7 : vector<4x128xf32>
    %44 = arith.addf %40, %43 : vector<4x128xf32>
    %45 = arith.addf %3, %44 : vector<4x128xf32>
    %c2_18 = arith.constant 2 : index
    %46 = memref.load %arg3[%c2_18] : memref<8xf32, #tpu.memory_space<smem>>
    %c8 = arith.constant 8 : index
    %47 = memref.load %arg2[%c8] : memref<32xf32, #tpu.memory_space<smem>>
    %48 = vector.broadcast %47 : f32 to vector<4x128xf32>
    %49 = arith.mulf %48, %1 : vector<4x128xf32>
    %50 = vector.broadcast %46 : f32 to vector<4x128xf32>
    %51 = arith.addf %50, %49 : vector<4x128xf32>
    %c9 = arith.constant 9 : index
    %52 = memref.load %arg2[%c9] : memref<32xf32, #tpu.memory_space<smem>>
    %53 = vector.broadcast %52 : f32 to vector<4x128xf32>
    %54 = arith.mulf %53, %3 : vector<4x128xf32>
    %55 = arith.addf %51, %54 : vector<4x128xf32>
    %c10 = arith.constant 10 : index
    %56 = memref.load %arg2[%c10] : memref<32xf32, #tpu.memory_space<smem>>
    %57 = vector.broadcast %56 : f32 to vector<4x128xf32>
    %58 = arith.mulf %57, %5 : vector<4x128xf32>
    %59 = arith.addf %55, %58 : vector<4x128xf32>
    %c11 = arith.constant 11 : index
    %60 = memref.load %arg2[%c11] : memref<32xf32, #tpu.memory_space<smem>>
    %61 = vector.broadcast %60 : f32 to vector<4x128xf32>
    %62 = arith.mulf %61, %7 : vector<4x128xf32>
    %63 = arith.addf %59, %62 : vector<4x128xf32>
    %64 = arith.addf %5, %63 : vector<4x128xf32>
    %c3_19 = arith.constant 3 : index
    %65 = memref.load %arg3[%c3_19] : memref<8xf32, #tpu.memory_space<smem>>
    %c12 = arith.constant 12 : index
    %66 = memref.load %arg2[%c12] : memref<32xf32, #tpu.memory_space<smem>>
    %67 = vector.broadcast %66 : f32 to vector<4x128xf32>
    %68 = arith.mulf %67, %1 : vector<4x128xf32>
    %69 = vector.broadcast %65 : f32 to vector<4x128xf32>
    %70 = arith.addf %69, %68 : vector<4x128xf32>
    %c13 = arith.constant 13 : index
    %71 = memref.load %arg2[%c13] : memref<32xf32, #tpu.memory_space<smem>>
    %72 = vector.broadcast %71 : f32 to vector<4x128xf32>
    %73 = arith.mulf %72, %3 : vector<4x128xf32>
    %74 = arith.addf %70, %73 : vector<4x128xf32>
    %c14 = arith.constant 14 : index
    %75 = memref.load %arg2[%c14] : memref<32xf32, #tpu.memory_space<smem>>
    %76 = vector.broadcast %75 : f32 to vector<4x128xf32>
    %77 = arith.mulf %76, %5 : vector<4x128xf32>
    %78 = arith.addf %74, %77 : vector<4x128xf32>
    %c15 = arith.constant 15 : index
    %79 = memref.load %arg2[%c15] : memref<32xf32, #tpu.memory_space<smem>>
    %80 = vector.broadcast %79 : f32 to vector<4x128xf32>
    %81 = arith.mulf %80, %7 : vector<4x128xf32>
    %82 = arith.addf %78, %81 : vector<4x128xf32>
    %83 = arith.addf %7, %82 : vector<4x128xf32>
    %c4_20 = arith.constant 4 : index
    %84 = memref.load %arg3[%c4_20] : memref<8xf32, #tpu.memory_space<smem>>
    %c16 = arith.constant 16 : index
    %85 = memref.load %arg2[%c16] : memref<32xf32, #tpu.memory_space<smem>>
    %86 = vector.broadcast %85 : f32 to vector<4x128xf32>
    %87 = arith.mulf %86, %26 : vector<4x128xf32>
    %88 = vector.broadcast %84 : f32 to vector<4x128xf32>
    %89 = arith.addf %88, %87 : vector<4x128xf32>
    %c17 = arith.constant 17 : index
    %90 = memref.load %arg2[%c17] : memref<32xf32, #tpu.memory_space<smem>>
    %91 = vector.broadcast %90 : f32 to vector<4x128xf32>
    %92 = arith.mulf %91, %45 : vector<4x128xf32>
    %93 = arith.addf %89, %92 : vector<4x128xf32>
    %c18 = arith.constant 18 : index
    %94 = memref.load %arg2[%c18] : memref<32xf32, #tpu.memory_space<smem>>
    %95 = vector.broadcast %94 : f32 to vector<4x128xf32>
    %96 = arith.mulf %95, %64 : vector<4x128xf32>
    %97 = arith.addf %93, %96 : vector<4x128xf32>
    %c19 = arith.constant 19 : index
    %98 = memref.load %arg2[%c19] : memref<32xf32, #tpu.memory_space<smem>>
    %99 = vector.broadcast %98 : f32 to vector<4x128xf32>
    %100 = arith.mulf %99, %83 : vector<4x128xf32>
    %101 = arith.addf %97, %100 : vector<4x128xf32>
    %102 = arith.addf %26, %101 : vector<4x128xf32>
    %c5_21 = arith.constant 5 : index
    %103 = memref.load %arg3[%c5_21] : memref<8xf32, #tpu.memory_space<smem>>
    %c20 = arith.constant 20 : index
    %104 = memref.load %arg2[%c20] : memref<32xf32, #tpu.memory_space<smem>>
    %105 = vector.broadcast %104 : f32 to vector<4x128xf32>
    %106 = arith.mulf %105, %26 : vector<4x128xf32>
    %107 = vector.broadcast %103 : f32 to vector<4x128xf32>
    %108 = arith.addf %107, %106 : vector<4x128xf32>
    %c21 = arith.constant 21 : index
    %109 = memref.load %arg2[%c21] : memref<32xf32, #tpu.memory_space<smem>>
    %110 = vector.broadcast %109 : f32 to vector<4x128xf32>
    %111 = arith.mulf %110, %45 : vector<4x128xf32>
    %112 = arith.addf %108, %111 : vector<4x128xf32>
    %c22 = arith.constant 22 : index
    %113 = memref.load %arg2[%c22] : memref<32xf32, #tpu.memory_space<smem>>
    %114 = vector.broadcast %113 : f32 to vector<4x128xf32>
    %115 = arith.mulf %114, %64 : vector<4x128xf32>
    %116 = arith.addf %112, %115 : vector<4x128xf32>
    %c23 = arith.constant 23 : index
    %117 = memref.load %arg2[%c23] : memref<32xf32, #tpu.memory_space<smem>>
    %118 = vector.broadcast %117 : f32 to vector<4x128xf32>
    %119 = arith.mulf %118, %83 : vector<4x128xf32>
    %120 = arith.addf %116, %119 : vector<4x128xf32>
    %121 = arith.addf %45, %120 : vector<4x128xf32>
    %c6_22 = arith.constant 6 : index
    %122 = memref.load %arg3[%c6_22] : memref<8xf32, #tpu.memory_space<smem>>
    %c24 = arith.constant 24 : index
    %123 = memref.load %arg2[%c24] : memref<32xf32, #tpu.memory_space<smem>>
    %124 = vector.broadcast %123 : f32 to vector<4x128xf32>
    %125 = arith.mulf %124, %26 : vector<4x128xf32>
    %126 = vector.broadcast %122 : f32 to vector<4x128xf32>
    %127 = arith.addf %126, %125 : vector<4x128xf32>
    %c25 = arith.constant 25 : index
    %128 = memref.load %arg2[%c25] : memref<32xf32, #tpu.memory_space<smem>>
    %129 = vector.broadcast %128 : f32 to vector<4x128xf32>
    %130 = arith.mulf %129, %45 : vector<4x128xf32>
    %131 = arith.addf %127, %130 : vector<4x128xf32>
    %c26 = arith.constant 26 : index
    %132 = memref.load %arg2[%c26] : memref<32xf32, #tpu.memory_space<smem>>
    %133 = vector.broadcast %132 : f32 to vector<4x128xf32>
    %134 = arith.mulf %133, %64 : vector<4x128xf32>
    %135 = arith.addf %131, %134 : vector<4x128xf32>
    %c27 = arith.constant 27 : index
    %136 = memref.load %arg2[%c27] : memref<32xf32, #tpu.memory_space<smem>>
    %137 = vector.broadcast %136 : f32 to vector<4x128xf32>
    %138 = arith.mulf %137, %83 : vector<4x128xf32>
    %139 = arith.addf %135, %138 : vector<4x128xf32>
    %140 = arith.addf %64, %139 : vector<4x128xf32>
    %c7_23 = arith.constant 7 : index
    %141 = memref.load %arg3[%c7_23] : memref<8xf32, #tpu.memory_space<smem>>
    %c28 = arith.constant 28 : index
    %142 = memref.load %arg2[%c28] : memref<32xf32, #tpu.memory_space<smem>>
    %143 = vector.broadcast %142 : f32 to vector<4x128xf32>
    %144 = arith.mulf %143, %26 : vector<4x128xf32>
    %145 = vector.broadcast %141 : f32 to vector<4x128xf32>
    %146 = arith.addf %145, %144 : vector<4x128xf32>
    %c29 = arith.constant 29 : index
    %147 = memref.load %arg2[%c29] : memref<32xf32, #tpu.memory_space<smem>>
    %148 = vector.broadcast %147 : f32 to vector<4x128xf32>
    %149 = arith.mulf %148, %45 : vector<4x128xf32>
    %150 = arith.addf %146, %149 : vector<4x128xf32>
    %c30 = arith.constant 30 : index
    %151 = memref.load %arg2[%c30] : memref<32xf32, #tpu.memory_space<smem>>
    %152 = vector.broadcast %151 : f32 to vector<4x128xf32>
    %153 = arith.mulf %152, %64 : vector<4x128xf32>
    %154 = arith.addf %150, %153 : vector<4x128xf32>
    %c31 = arith.constant 31 : index
    %155 = memref.load %arg2[%c31] : memref<32xf32, #tpu.memory_space<smem>>
    %156 = vector.broadcast %155 : f32 to vector<4x128xf32>
    %157 = arith.mulf %156, %83 : vector<4x128xf32>
    %158 = arith.addf %154, %157 : vector<4x128xf32>
    %159 = arith.addf %83, %158 : vector<4x128xf32>
    %c0_24 = arith.constant 0 : index
    %160 = memref.load %arg5[%c0_24] : memref<4xf32, #tpu.memory_space<smem>>
    %c0_25 = arith.constant 0 : index
    %161 = memref.load %arg4[%c0_25] : memref<32xf32, #tpu.memory_space<smem>>
    %162 = vector.broadcast %161 : f32 to vector<4x128xf32>
    %163 = arith.mulf %162, %102 : vector<4x128xf32>
    %164 = vector.broadcast %160 : f32 to vector<4x128xf32>
    %165 = arith.addf %164, %163 : vector<4x128xf32>
    %c4_26 = arith.constant 4 : index
    %166 = memref.load %arg4[%c4_26] : memref<32xf32, #tpu.memory_space<smem>>
    %c0_27 = arith.constant 0 : index
    %c0_28 = arith.constant 0 : index
    %c0_29 = arith.constant 0 : index
    %c0_30 = arith.constant 0 : index
    %167 = vector.load %arg6[%c0_27, %c0_28, %c0_29, %c0_30] : memref<1x4x4x128xf32, #tpu.memory_space<vmem>>, vector<1x1x4x128xf32>
    %168 = vector.shape_cast %167 : vector<1x1x4x128xf32> to vector<4x128xf32>
    %169 = vector.broadcast %166 : f32 to vector<4x128xf32>
    %170 = arith.mulf %169, %168 : vector<4x128xf32>
    %171 = arith.addf %165, %170 : vector<4x128xf32>
    %c1_31 = arith.constant 1 : index
    %172 = memref.load %arg4[%c1_31] : memref<32xf32, #tpu.memory_space<smem>>
    %173 = vector.broadcast %172 : f32 to vector<4x128xf32>
    %174 = arith.mulf %173, %121 : vector<4x128xf32>
    %175 = arith.addf %171, %174 : vector<4x128xf32>
    %c5_32 = arith.constant 5 : index
    %176 = memref.load %arg4[%c5_32] : memref<32xf32, #tpu.memory_space<smem>>
    %c0_33 = arith.constant 0 : index
    %c1_34 = arith.constant 1 : index
    %c0_35 = arith.constant 0 : index
    %c0_36 = arith.constant 0 : index
    %177 = vector.load %arg6[%c0_33, %c1_34, %c0_35, %c0_36] : memref<1x4x4x128xf32, #tpu.memory_space<vmem>>, vector<1x1x4x128xf32>
    %178 = vector.shape_cast %177 : vector<1x1x4x128xf32> to vector<4x128xf32>
    %179 = vector.broadcast %176 : f32 to vector<4x128xf32>
    %180 = arith.mulf %179, %178 : vector<4x128xf32>
    %181 = arith.addf %175, %180 : vector<4x128xf32>
    %c2_37 = arith.constant 2 : index
    %182 = memref.load %arg4[%c2_37] : memref<32xf32, #tpu.memory_space<smem>>
    %183 = vector.broadcast %182 : f32 to vector<4x128xf32>
    %184 = arith.mulf %183, %140 : vector<4x128xf32>
    %185 = arith.addf %181, %184 : vector<4x128xf32>
    %c6_38 = arith.constant 6 : index
    %186 = memref.load %arg4[%c6_38] : memref<32xf32, #tpu.memory_space<smem>>
    %c0_39 = arith.constant 0 : index
    %c2_40 = arith.constant 2 : index
    %c0_41 = arith.constant 0 : index
    %c0_42 = arith.constant 0 : index
    %187 = vector.load %arg6[%c0_39, %c2_40, %c0_41, %c0_42] : memref<1x4x4x128xf32, #tpu.memory_space<vmem>>, vector<1x1x4x128xf32>
    %188 = vector.shape_cast %187 : vector<1x1x4x128xf32> to vector<4x128xf32>
    %189 = vector.broadcast %186 : f32 to vector<4x128xf32>
    %190 = arith.mulf %189, %188 : vector<4x128xf32>
    %191 = arith.addf %185, %190 : vector<4x128xf32>
    %c3_43 = arith.constant 3 : index
    %192 = memref.load %arg4[%c3_43] : memref<32xf32, #tpu.memory_space<smem>>
    %193 = vector.broadcast %192 : f32 to vector<4x128xf32>
    %194 = arith.mulf %193, %159 : vector<4x128xf32>
    %195 = arith.addf %191, %194 : vector<4x128xf32>
    %c7_44 = arith.constant 7 : index
    %196 = memref.load %arg4[%c7_44] : memref<32xf32, #tpu.memory_space<smem>>
    %c0_45 = arith.constant 0 : index
    %c3_46 = arith.constant 3 : index
    %c0_47 = arith.constant 0 : index
    %c0_48 = arith.constant 0 : index
    %197 = vector.load %arg6[%c0_45, %c3_46, %c0_47, %c0_48] : memref<1x4x4x128xf32, #tpu.memory_space<vmem>>, vector<1x1x4x128xf32>
    %198 = vector.shape_cast %197 : vector<1x1x4x128xf32> to vector<4x128xf32>
    %199 = vector.broadcast %196 : f32 to vector<4x128xf32>
    %200 = arith.mulf %199, %198 : vector<4x128xf32>
    %201 = arith.addf %195, %200 : vector<4x128xf32>
    %c0_49 = arith.constant 0 : index
    %c0_50 = arith.constant 0 : index
    %c0_51 = arith.constant 0 : index
    %c0_52 = arith.constant 0 : index
    %202 = vector.load %arg7[%c0_49, %c0_50, %c0_51, %c0_52] : memref<1x4x4x128xf32, #tpu.memory_space<vmem>>, vector<1x1x4x128xf32>
    %203 = vector.shape_cast %202 : vector<1x1x4x128xf32> to vector<4x128xf32>
    %204 = vector.shape_cast %201 : vector<4x128xf32> to vector<1x1x4x128xf32>
    tpu.vector_store %arg7[%c0_49, %c0_50, %c0_51, %c0_52], %204 {strides = array<i32>} : memref<1x4x4x128xf32, #tpu.memory_space<vmem>>, vector<1x1x4x128xf32>,
    %c1_53 = arith.constant 1 : index
    %205 = memref.load %arg5[%c1_53] : memref<4xf32, #tpu.memory_space<smem>>
    %c8_54 = arith.constant 8 : index
    %206 = memref.load %arg4[%c8_54] : memref<32xf32, #tpu.memory_space<smem>>
    %207 = vector.broadcast %206 : f32 to vector<4x128xf32>
    %208 = arith.mulf %207, %102 : vector<4x128xf32>
    %209 = vector.broadcast %205 : f32 to vector<4x128xf32>
    %210 = arith.addf %209, %208 : vector<4x128xf32>
    %c12_55 = arith.constant 12 : index
    %211 = memref.load %arg4[%c12_55] : memref<32xf32, #tpu.memory_space<smem>>
    %c0_56 = arith.constant 0 : index
    %c0_57 = arith.constant 0 : index
    %c0_58 = arith.constant 0 : index
    %c0_59 = arith.constant 0 : index
    %212 = vector.load %arg6[%c0_56, %c0_57, %c0_58, %c0_59] : memref<1x4x4x128xf32, #tpu.memory_space<vmem>>, vector<1x1x4x128xf32>
    %213 = vector.shape_cast %212 : vector<1x1x4x128xf32> to vector<4x128xf32>
    %214 = vector.broadcast %211 : f32 to vector<4x128xf32>
    %215 = arith.mulf %214, %213 : vector<4x128xf32>
    %216 = arith.addf %210, %215 : vector<4x128xf32>
    %c9_60 = arith.constant 9 : index
    %217 = memref.load %arg4[%c9_60] : memref<32xf32, #tpu.memory_space<smem>>
    %218 = vector.broadcast %217 : f32 to vector<4x128xf32>
    %219 = arith.mulf %218, %121 : vector<4x128xf32>
    %220 = arith.addf %216, %219 : vector<4x128xf32>
    %c13_61 = arith.constant 13 : index
    %221 = memref.load %arg4[%c13_61] : memref<32xf32, #tpu.memory_space<smem>>
    %c0_62 = arith.constant 0 : index
    %c1_63 = arith.constant 1 : index
    %c0_64 = arith.constant 0 : index
    %c0_65 = arith.constant 0 : index
    %222 = vector.load %arg6[%c0_62, %c1_63, %c0_64, %c0_65] : memref<1x4x4x128xf32, #tpu.memory_space<vmem>>, vector<1x1x4x128xf32>
    %223 = vector.shape_cast %222 : vector<1x1x4x128xf32> to vector<4x128xf32>
    %224 = vector.broadcast %221 : f32 to vector<4x128xf32>
    %225 = arith.mulf %224, %223 : vector<4x128xf32>
    %226 = arith.addf %220, %225 : vector<4x128xf32>
    %c10_66 = arith.constant 10 : index
    %227 = memref.load %arg4[%c10_66] : memref<32xf32, #tpu.memory_space<smem>>
    %228 = vector.broadcast %227 : f32 to vector<4x128xf32>
    %229 = arith.mulf %228, %140 : vector<4x128xf32>
    %230 = arith.addf %226, %229 : vector<4x128xf32>
    %c14_67 = arith.constant 14 : index
    %231 = memref.load %arg4[%c14_67] : memref<32xf32, #tpu.memory_space<smem>>
    %c0_68 = arith.constant 0 : index
    %c2_69 = arith.constant 2 : index
    %c0_70 = arith.constant 0 : index
    %c0_71 = arith.constant 0 : index
    %232 = vector.load %arg6[%c0_68, %c2_69, %c0_70, %c0_71] : memref<1x4x4x128xf32, #tpu.memory_space<vmem>>, vector<1x1x4x128xf32>
    %233 = vector.shape_cast %232 : vector<1x1x4x128xf32> to vector<4x128xf32>
    %234 = vector.broadcast %231 : f32 to vector<4x128xf32>
    %235 = arith.mulf %234, %233 : vector<4x128xf32>
    %236 = arith.addf %230, %235 : vector<4x128xf32>
    %c11_72 = arith.constant 11 : index
    %237 = memref.load %arg4[%c11_72] : memref<32xf32, #tpu.memory_space<smem>>
    %238 = vector.broadcast %237 : f32 to vector<4x128xf32>
    %239 = arith.mulf %238, %159 : vector<4x128xf32>
    %240 = arith.addf %236, %239 : vector<4x128xf32>
    %c15_73 = arith.constant 15 : index
    %241 = memref.load %arg4[%c15_73] : memref<32xf32, #tpu.memory_space<smem>>
    %c0_74 = arith.constant 0 : index
    %c3_75 = arith.constant 3 : index
    %c0_76 = arith.constant 0 : index
    %c0_77 = arith.constant 0 : index
    %242 = vector.load %arg6[%c0_74, %c3_75, %c0_76, %c0_77] : memref<1x4x4x128xf32, #tpu.memory_space<vmem>>, vector<1x1x4x128xf32>
    %243 = vector.shape_cast %242 : vector<1x1x4x128xf32> to vector<4x128xf32>
    %244 = vector.broadcast %241 : f32 to vector<4x128xf32>
    %245 = arith.mulf %244, %243 : vector<4x128xf32>
    %246 = arith.addf %240, %245 : vector<4x128xf32>
    %c0_78 = arith.constant 0 : index
    %c1_79 = arith.constant 1 : index
    %c0_80 = arith.constant 0 : index
    %c0_81 = arith.constant 0 : index
    %247 = vector.load %arg7[%c0_78, %c1_79, %c0_80, %c0_81] : memref<1x4x4x128xf32, #tpu.memory_space<vmem>>, vector<1x1x4x128xf32>
    %248 = vector.shape_cast %247 : vector<1x1x4x128xf32> to vector<4x128xf32>
    %249 = vector.shape_cast %246 : vector<4x128xf32> to vector<1x1x4x128xf32>
    tpu.vector_store %arg7[%c0_78, %c1_79, %c0_80, %c0_81], %249 {strides = array<i32>} : memref<1x4x4x128xf32, #tpu.memory_space<vmem>>, vector<1x1x4x128xf32>,
    %c2_82 = arith.constant 2 : index
    %250 = memref.load %arg5[%c2_82] : memref<4xf32, #tpu.memory_space<smem>>
    %c16_83 = arith.constant 16 : index
    %251 = memref.load %arg4[%c16_83] : memref<32xf32, #tpu.memory_space<smem>>
    %252 = vector.broadcast %251 : f32 to vector<4x128xf32>
    %253 = arith.mulf %252, %102 : vector<4x128xf32>
    %254 = vector.broadcast %250 : f32 to vector<4x128xf32>
    %255 = arith.addf %254, %253 : vector<4x128xf32>
    %c20_84 = arith.constant 20 : index
    %256 = memref.load %arg4[%c20_84] : memref<32xf32, #tpu.memory_space<smem>>
    %c0_85 = arith.constant 0 : index
    %c0_86 = arith.constant 0 : index
    %c0_87 = arith.constant 0 : index
    %c0_88 = arith.constant 0 : index
    %257 = vector.load %arg6[%c0_85, %c0_86, %c0_87, %c0_88] : memref<1x4x4x128xf32, #tpu.memory_space<vmem>>, vector<1x1x4x128xf32>
    %258 = vector.shape_cast %257 : vector<1x1x4x128xf32> to vector<4x128xf32>
    %259 = vector.broadcast %256 : f32 to vector<4x128xf32>
    %260 = arith.mulf %259, %258 : vector<4x128xf32>
    %261 = arith.addf %255, %260 : vector<4x128xf32>
    %c17_89 = arith.constant 17 : index
    %262 = memref.load %arg4[%c17_89] : memref<32xf32, #tpu.memory_space<smem>>
    %263 = vector.broadcast %262 : f32 to vector<4x128xf32>
    %264 = arith.mulf %263, %121 : vector<4x128xf32>
    %265 = arith.addf %261, %264 : vector<4x128xf32>
    %c21_90 = arith.constant 21 : index
    %266 = memref.load %arg4[%c21_90] : memref<32xf32, #tpu.memory_space<smem>>
    %c0_91 = arith.constant 0 : index
    %c1_92 = arith.constant 1 : index
    %c0_93 = arith.constant 0 : index
    %c0_94 = arith.constant 0 : index
    %267 = vector.load %arg6[%c0_91, %c1_92, %c0_93, %c0_94] : memref<1x4x4x128xf32, #tpu.memory_space<vmem>>, vector<1x1x4x128xf32>
    %268 = vector.shape_cast %267 : vector<1x1x4x128xf32> to vector<4x128xf32>
    %269 = vector.broadcast %266 : f32 to vector<4x128xf32>
    %270 = arith.mulf %269, %268 : vector<4x128xf32>
    %271 = arith.addf %265, %270 : vector<4x128xf32>
    %c18_95 = arith.constant 18 : index
    %272 = memref.load %arg4[%c18_95] : memref<32xf32, #tpu.memory_space<smem>>
    %273 = vector.broadcast %272 : f32 to vector<4x128xf32>
    %274 = arith.mulf %273, %140 : vector<4x128xf32>
    %275 = arith.addf %271, %274 : vector<4x128xf32>
    %c22_96 = arith.constant 22 : index
    %276 = memref.load %arg4[%c22_96] : memref<32xf32, #tpu.memory_space<smem>>
    %c0_97 = arith.constant 0 : index
    %c2_98 = arith.constant 2 : index
    %c0_99 = arith.constant 0 : index
    %c0_100 = arith.constant 0 : index
    %277 = vector.load %arg6[%c0_97, %c2_98, %c0_99, %c0_100] : memref<1x4x4x128xf32, #tpu.memory_space<vmem>>, vector<1x1x4x128xf32>
    %278 = vector.shape_cast %277 : vector<1x1x4x128xf32> to vector<4x128xf32>
    %279 = vector.broadcast %276 : f32 to vector<4x128xf32>
    %280 = arith.mulf %279, %278 : vector<4x128xf32>
    %281 = arith.addf %275, %280 : vector<4x128xf32>
    %c19_101 = arith.constant 19 : index
    %282 = memref.load %arg4[%c19_101] : memref<32xf32, #tpu.memory_space<smem>>
    %283 = vector.broadcast %282 : f32 to vector<4x128xf32>
    %284 = arith.mulf %283, %159 : vector<4x128xf32>
    %285 = arith.addf %281, %284 : vector<4x128xf32>
    %c23_102 = arith.constant 23 : index
    %286 = memref.load %arg4[%c23_102] : memref<32xf32, #tpu.memory_space<smem>>
    %c0_103 = arith.constant 0 : index
    %c3_104 = arith.constant 3 : index
    %c0_105 = arith.constant 0 : index
    %c0_106 = arith.constant 0 : index
    %287 = vector.load %arg6[%c0_103, %c3_104, %c0_105, %c0_106] : memref<1x4x4x128xf32, #tpu.memory_space<vmem>>, vector<1x1x4x128xf32>
    %288 = vector.shape_cast %287 : vector<1x1x4x128xf32> to vector<4x128xf32>
    %289 = vector.broadcast %286 : f32 to vector<4x128xf32>
    %290 = arith.mulf %289, %288 : vector<4x128xf32>
    %291 = arith.addf %285, %290 : vector<4x128xf32>
    %c0_107 = arith.constant 0 : index
    %c2_108 = arith.constant 2 : index
    %c0_109 = arith.constant 0 : index
    %c0_110 = arith.constant 0 : index
    %292 = vector.load %arg7[%c0_107, %c2_108, %c0_109, %c0_110] : memref<1x4x4x128xf32, #tpu.memory_space<vmem>>, vector<1x1x4x128xf32>
    %293 = vector.shape_cast %292 : vector<1x1x4x128xf32> to vector<4x128xf32>
    %294 = vector.shape_cast %291 : vector<4x128xf32> to vector<1x1x4x128xf32>
    tpu.vector_store %arg7[%c0_107, %c2_108, %c0_109, %c0_110], %294 {strides = array<i32>} : memref<1x4x4x128xf32, #tpu.memory_space<vmem>>, vector<1x1x4x128xf32>,
    %c3_111 = arith.constant 3 : index
    %295 = memref.load %arg5[%c3_111] : memref<4xf32, #tpu.memory_space<smem>>
    %c24_112 = arith.constant 24 : index
    %296 = memref.load %arg4[%c24_112] : memref<32xf32, #tpu.memory_space<smem>>
    %297 = vector.broadcast %296 : f32 to vector<4x128xf32>
    %298 = arith.mulf %297, %102 : vector<4x128xf32>
    %299 = vector.broadcast %295 : f32 to vector<4x128xf32>
    %300 = arith.addf %299, %298 : vector<4x128xf32>
    %c28_113 = arith.constant 28 : index
    %301 = memref.load %arg4[%c28_113] : memref<32xf32, #tpu.memory_space<smem>>
    %c0_114 = arith.constant 0 : index
    %c0_115 = arith.constant 0 : index
    %c0_116 = arith.constant 0 : index
    %c0_117 = arith.constant 0 : index
    %302 = vector.load %arg6[%c0_114, %c0_115, %c0_116, %c0_117] : memref<1x4x4x128xf32, #tpu.memory_space<vmem>>, vector<1x1x4x128xf32>
    %303 = vector.shape_cast %302 : vector<1x1x4x128xf32> to vector<4x128xf32>
    %304 = vector.broadcast %301 : f32 to vector<4x128xf32>
    %305 = arith.mulf %304, %303 : vector<4x128xf32>
    %306 = arith.addf %300, %305 : vector<4x128xf32>
    %c25_118 = arith.constant 25 : index
    %307 = memref.load %arg4[%c25_118] : memref<32xf32, #tpu.memory_space<smem>>
    %308 = vector.broadcast %307 : f32 to vector<4x128xf32>
    %309 = arith.mulf %308, %121 : vector<4x128xf32>
    %310 = arith.addf %306, %309 : vector<4x128xf32>
    %c29_119 = arith.constant 29 : index
    %311 = memref.load %arg4[%c29_119] : memref<32xf32, #tpu.memory_space<smem>>
    %c0_120 = arith.constant 0 : index
    %c1_121 = arith.constant 1 : index
    %c0_122 = arith.constant 0 : index
    %c0_123 = arith.constant 0 : index
    %312 = vector.load %arg6[%c0_120, %c1_121, %c0_122, %c0_123] : memref<1x4x4x128xf32, #tpu.memory_space<vmem>>, vector<1x1x4x128xf32>
    %313 = vector.shape_cast %312 : vector<1x1x4x128xf32> to vector<4x128xf32>
    %314 = vector.broadcast %311 : f32 to vector<4x128xf32>
    %315 = arith.mulf %314, %313 : vector<4x128xf32>
    %316 = arith.addf %310, %315 : vector<4x128xf32>
    %c26_124 = arith.constant 26 : index
    %317 = memref.load %arg4[%c26_124] : memref<32xf32, #tpu.memory_space<smem>>
    %318 = vector.broadcast %317 : f32 to vector<4x128xf32>
    %319 = arith.mulf %318, %140 : vector<4x128xf32>
    %320 = arith.addf %316, %319 : vector<4x128xf32>
    %c30_125 = arith.constant 30 : index
    %321 = memref.load %arg4[%c30_125] : memref<32xf32, #tpu.memory_space<smem>>
    %c0_126 = arith.constant 0 : index
    %c2_127 = arith.constant 2 : index
    %c0_128 = arith.constant 0 : index
    %c0_129 = arith.constant 0 : index
    %322 = vector.load %arg6[%c0_126, %c2_127, %c0_128, %c0_129] : memref<1x4x4x128xf32, #tpu.memory_space<vmem>>, vector<1x1x4x128xf32>
    %323 = vector.shape_cast %322 : vector<1x1x4x128xf32> to vector<4x128xf32>
    %324 = vector.broadcast %321 : f32 to vector<4x128xf32>
    %325 = arith.mulf %324, %323 : vector<4x128xf32>
    %326 = arith.addf %320, %325 : vector<4x128xf32>
    %c27_130 = arith.constant 27 : index
    %327 = memref.load %arg4[%c27_130] : memref<32xf32, #tpu.memory_space<smem>>
    %328 = vector.broadcast %327 : f32 to vector<4x128xf32>
    %329 = arith.mulf %328, %159 : vector<4x128xf32>
    %330 = arith.addf %326, %329 : vector<4x128xf32>
    %c31_131 = arith.constant 31 : index
    %331 = memref.load %arg4[%c31_131] : memref<32xf32, #tpu.memory_space<smem>>
    %c0_132 = arith.constant 0 : index
    %c3_133 = arith.constant 3 : index
    %c0_134 = arith.constant 0 : index
    %c0_135 = arith.constant 0 : index
    %332 = vector.load %arg6[%c0_132, %c3_133, %c0_134, %c0_135] : memref<1x4x4x128xf32, #tpu.memory_space<vmem>>, vector<1x1x4x128xf32>
    %333 = vector.shape_cast %332 : vector<1x1x4x128xf32> to vector<4x128xf32>
    %334 = vector.broadcast %331 : f32 to vector<4x128xf32>
    %335 = arith.mulf %334, %333 : vector<4x128xf32>
    %336 = arith.addf %330, %335 : vector<4x128xf32>
    %c0_136 = arith.constant 0 : index
    %c3_137 = arith.constant 3 : index
    %c0_138 = arith.constant 0 : index
    %c0_139 = arith.constant 0 : index
    %337 = vector.load %arg7[%c0_136, %c3_137, %c0_138, %c0_139] : memref<1x4x4x128xf32, #tpu.memory_space<vmem>>, vector<1x1x4x128xf32>
    %338 = vector.shape_cast %337 : vector<1x1x4x128xf32> to vector<4x128xf32>
    %339 = vector.shape_cast %336 : vector<4x128xf32> to vector<1x1x4x128xf32>
    tpu.vector_store %arg7[%c0_136, %c3_137, %c0_138, %c0_139], %339 {strides = array<i32>} : memref<1x4x4x128xf32, #tpu.memory_space<vmem>>, vector<1x1x4x128xf32>,
    return
  }
  func.func @transform_0(%arg0: i32, %arg1: i32) -> i32 {
    %c0_i32 = arith.constant 0 : i32
    %c0_i32_0 = arith.constant 0 : i32
    return %c0_i32 : i32
  }
  func.func @transform_1(%arg0: i32, %arg1: i32) -> i32 {
    %c0_i32 = arith.constant 0 : i32
    %c0_i32_0 = arith.constant 0 : i32
    return %c0_i32 : i32
  }
  func.func @transform_2(%arg0: i32, %arg1: i32) -> i32 {
    %c0_i32 = arith.constant 0 : i32
    %c0_i32_0 = arith.constant 0 : i32
    return %c0_i32 : i32
  }
  func.func @transform_3(%arg0: i32, %arg1: i32) -> i32 {
    %c0_i32 = arith.constant 0 : i32
    %c0_i32_0 = arith.constant 0 : i32
    return %c0_i32 : i32
  }
  func.func @transform_4(%arg0: i32, %arg1: i32) -> (i32, i32, i32, i32) {
    %c0_i32 = arith.constant 0 : i32
    %c0_i32_0 = arith.constant 0 : i32
    %c0_i32_1 = arith.constant 0 : i32
    return %arg0, %c0_i32, %arg1, %c0_i32_0 : i32, i32, i32, i32
  }
  func.func @transform_5(%arg0: i32, %arg1: i32) -> (i32, i32, i32, i32) {
    %c0_i32 = arith.constant 0 : i32
    %c0_i32_0 = arith.constant 0 : i32
    %c0_i32_1 = arith.constant 0 : i32
    return %arg0, %c0_i32, %arg1, %c0_i32_0 : i32, i32, i32, i32
  }
}

</mosaic_0001>

<llo_original>
// kernel: tpu_custom_call.1
$region0: #{tpu_custom_call.1}
  #allocation0 [shape = 'u32[]', space=smem, size = 0x4, offset = 0x4, fixed_abs, tag = 'smem constant byte address 0x4 - core index']
  #allocation1 [shape = 'u32[144,128]{1,0:T(1,128)}', space=vmem, size = 0x12000, scoped, tag = 'internal scratch']
  %s0 = inlined_call_operand.hbm [shape: f32[32], index: 0, kind: input, shape index: {}]
  %s1 = inlined_call_operand.vmem [shape: f32[8], index: 1, kind: input, shape index: {}]
  %s2 = inlined_call_operand.vmem [shape: f32[32], index: 2, kind: input, shape index: {}]
  %s3 = inlined_call_operand.vmem [shape: f32[4], index: 3, kind: input, shape index: {}]
  %s4 = inlined_call_operand.hbm [shape: f32[2,4,4,128], index: 4, kind: input, shape index: {}]
  %s5 = inlined_call_operand.hbm [shape: f32[2,4,4,128], index: 5, kind: output, shape index: {}]
  %s6 = sld [smem:[#allocation0]]
  $region73: #{tpu_custom_call.1} parent=0
    _
  %s8 = ssub.s32 1, %s6
  %s9 = scalar_select 0, %s8, %s6
  $region1: #{tpu_custom_call.1} parent=0
    #allocation2 [shape = 'u8[512]{0}', space=smem, size = 0x200, scoped, tag = 'input window, operand 0, single buffered']
    #allocation3 [shape = 's32[2]{0}', space=sflag, size = 0x8, scoped, tag = 'scoped memory for tpu_custom_call.1']
    #allocation4 [shape = 's32[2]{0}', space=sflag, size = 0x8, scoped, tag = 'scoped memory for tpu_custom_call.1']
    #allocation5 [shape = 's32[2]{0}', space=sflag, size = 0x8, scoped, tag = 'scoped memory for tpu_custom_call.1']
    #allocation6 [shape = 's32[2]{0}', space=sflag, size = 0x8, scoped, tag = 'scoped memory for tpu_custom_call.1']
    #allocation7 [shape = 'u8[512]{0}', space=smem, size = 0x200, scoped, tag = 'input window, operand 1, single buffered']
    #allocation8 [shape = 'u8[512]{0}', space=smem, size = 0x200, scoped, tag = 'input window, operand 2, single buffered']
    #allocation9 [shape = 's32[1]{0}', space=sflag, size = 0x4, scoped, tag = 'scoped memory for tpu_custom_call.1']
    #allocation10 [shape = 'u8[512]{0}', space=smem, size = 0x200, scoped, tag = 'input window, operand 3, single buffered']
    #allocation11 [shape = 'u8[16384]{0}', space=vmem, size = 0x4000, scoped, tag = 'input window, operand 4']
    #allocation12 [shape = 'u8[16384]{0}', space=vmem, size = 0x4000, scoped, tag = 'output window, operand 0']
    %10 = vsyncpa [#allocation5], 0
    %11 = vsyncpa [#allocation6], 0
    %12 = vsyncpa [#allocation9], 0
    %13 = vsyncpa [#allocation3], 0
    %s14 = scalar_lea.sflag [#allocation3], 1
    %15 = vsyncpa %s14, 0
    %16 = vsyncpa [#allocation4], 0
    %s17 = scalar_lea.sflag [#allocation4], 1
    %18 = vsyncpa %s17, 0
    loop: start=0, step=1, limit=4
    $region2: #{tpu_custom_call.1} parent=1 // loop_pre_header
      _
    $region3: #{tpu_custom_call.1} parent=1 // loop_header
      %s20 = sphi 0, %s24
      %p21 = scmp.ge.s32.totalorder %s20, 4
      %s27 = sphi 0, %s39
      %s28 = sphi 0, %s35
      %s29 = sphi 0, %s27
      %s30 = sphi 0, %s28
      %s31 = sphi 0, %s29
      %s32 = sphi 0, %s30
      %s40 = sphi 0, %s40
      %s42 = sphi 0, %s40
      %s43 = sphi 0, %s42
      %s57 = sphi 0, %s43
      %s61 = sphi 0, %s61
      %s63 = sphi 0, %s61
      %s64 = sphi 0, %s63
      %s78 = sphi 0, %s64
      %s82 = sphi 0, %s82
      %s84 = sphi 0, %s82
      %s85 = sphi 0, %s84
      %s99 = sphi 0, %s85
      %s103 = sphi 0, %s103
      %s105 = sphi 0, %s103
      %s106 = sphi 0, %s105
      %s120 = sphi 0, %s106
      %s128 = sphi 0, %s130
      %s131 = sphi 0, %s128
      %s132 = sphi 0, %s131
      %s148 = sphi 0, %s132
      %s156 = sphi 0, %s158
      %s159 = sphi 0, %s156
      %s160 = sphi 0, %s159
      %s176 = sphi 0, %s160
    $region4: #{tpu_custom_call.1} parent=1 // loop_header_branch
      %23 = sbr.rel (%p21) target = $region8
    $region5: #{tpu_custom_call.1} parent=1 // loop_body
      %s25 = ssub.s32 %s20, 1
      %s26 = ssub.s32 %s20, 2
      %s33 = sadd.s32 1, %s28
      %p34 = scmp.ge.s32.totalorder %s33, 1
      %s35 = scalar_select %p34, 0, %s33
      %s36 = sadd.s32 1, %s27
      %s37 = scalar_select %p34, %s36, %s27
      %p38 = scmp.ge.s32.totalorder %s37, 2
      %s39 = scalar_select %p38, 0, %s37
      %s41 = sadd.s32 %s40, 1
      %p44 = scmp.eq.s32.totalorder %s20, 1
      %p45 = scmp.ne.s32.totalorder %s40, %s42
      %p46 = scmp.eq.s32.totalorder %s20, 0
      %p47 = por %p45, %p46
      %p48 = scmp.ne.s32.totalorder %s40, %s42
      %p49 = scmp.eq.s32.totalorder %s25, 1
      %p50 = por %p48, %p49
      %p51 = scmp.ne.s32.totalorder %s42, %s43
      %p52 = scmp.eq.s32.totalorder %s25, 0
      %p53 = por %p51, %p52
      %p54 = scmp.ne.s32.totalorder %s42, %s43
      %p55 = scmp.eq.s32.totalorder %s26, 1
      %p56 = por %p54, %p55
      %p58 = scmp.ne.s32.totalorder %s43, %s57
      %p59 = scmp.eq.s32.totalorder %s26, 0
      %p60 = por %p58, %p59
      %s62 = sadd.s32 %s61, 1
      %p65 = scmp.eq.s32.totalorder %s20, 1
      %p66 = scmp.ne.s32.totalorder %s61, %s63
      %p67 = scmp.eq.s32.totalorder %s20, 0
      %p68 = por %p66, %p67
      %p69 = scmp.ne.s32.totalorder %s61, %s63
      %p70 = scmp.eq.s32.totalorder %s25, 1
      %p71 = por %p69, %p70
      %p72 = scmp.ne.s32.totalorder %s63, %s64
      %p73 = scmp.eq.s32.totalorder %s25, 0
      %p74 = por %p72, %p73
      %p75 = scmp.ne.s32.totalorder %s63, %s64
      %p76 = scmp.eq.s32.totalorder %s26, 1
      %p77 = por %p75, %p76
      %p79 = scmp.ne.s32.totalorder %s64, %s78
      %p80 = scmp.eq.s32.totalorder %s26, 0
      %p81 = por %p79, %p80
      %s83 = sadd.s32 %s82, 1
      %p86 = scmp.eq.s32.totalorder %s20, 1
      %p87 = scmp.ne.s32.totalorder %s82, %s84
      %p88 = scmp.eq.s32.totalorder %s20, 0
      %p89 = por %p87, %p88
      %p90 = scmp.ne.s32.totalorder %s82, %s84
      %p91 = scmp.eq.s32.totalorder %s25, 1
      %p92 = por %p90, %p91
      %p93 = scmp.ne.s32.totalorder %s84, %s85
      %p94 = scmp.eq.s32.totalorder %s25, 0
      %p95 = por %p93, %p94
      %p96 = scmp.ne.s32.totalorder %s84, %s85
      %p97 = scmp.eq.s32.totalorder %s26, 1
      %p98 = por %p96, %p97
      %p100 = scmp.ne.s32.totalorder %s85, %s99
      %p101 = scmp.eq.s32.totalorder %s26, 0
      %p102 = por %p100, %p101
      %s104 = sadd.s32 %s103, 1
      %p107 = scmp.eq.s32.totalorder %s20, 1
      %p108 = scmp.ne.s32.totalorder %s103, %s105
      %p109 = scmp.eq.s32.totalorder %s20, 0
      %p110 = por %p108, %p109
      %p111 = scmp.ne.s32.totalorder %s103, %s105
      %p112 = scmp.eq.s32.totalorder %s25, 1
      %p113 = por %p111, %p112
      %p114 = scmp.ne.s32.totalorder %s105, %s106
      %p115 = scmp.eq.s32.totalorder %s25, 0
      %p116 = por %p114, %p115
      %p117 = scmp.ne.s32.totalorder %s105, %s106
      %p118 = scmp.eq.s32.totalorder %s26, 1
      %p119 = por %p117, %p118
      %p121 = scmp.ne.s32.totalorder %s106, %s120
      %p122 = scmp.eq.s32.totalorder %s26, 0
      %p123 = por %p121, %p122
      %s124 = ssub.s32 %s27, %s39
      %s125 = ssub.s32 %s28, %s35
      %s126 = sor.u32 %s124, %s125
      %p127 = scmp.eq.s32.totalorder %s126, 0
      %s129 = sadd.s32 %s128, 1
      %s130 = scalar_select %p127, %s128, %s129
      %p133 = pneg %p127
      %p134 = scmp.eq.s32.totalorder %s20, 1
      %p135 = por %p133, %p134
      %p136 = scmp.ne.s32.totalorder %s128, %s131
      %p137 = scmp.eq.s32.totalorder %s20, 0
      %p138 = por %p136, %p137
      %p139 = scmp.ne.s32.totalorder %s128, %s131
      %p140 = scmp.eq.s32.totalorder %s25, 1
      %p141 = por %p139, %p140
      %p142 = scmp.ne.s32.totalorder %s131, %s132
      %p143 = scmp.eq.s32.totalorder %s25, 0
      %p144 = por %p142, %p143
      %p145 = scmp.ne.s32.totalorder %s131, %s132
      %p146 = scmp.eq.s32.totalorder %s26, 1
      %p147 = por %p145, %p146
      %p149 = scmp.ne.s32.totalorder %s132, %s148
      %p150 = scmp.eq.s32.totalorder %s26, 0
      %p151 = por %p149, %p150
      %s152 = ssub.s32 %s27, %s39
      %s153 = ssub.s32 %s28, %s35
      %s154 = sor.u32 %s152, %s153
      %p155 = scmp.eq.s32.totalorder %s154, 0
      %s157 = sadd.s32 %s156, 1
      %s158 = scalar_select %p155, %s156, %s157
      %p161 = pneg %p155
      %p162 = scmp.eq.s32.totalorder %s20, 1
      %p163 = por %p161, %p162
      %p164 = scmp.ne.s32.totalorder %s156, %s159
      %p165 = scmp.eq.s32.totalorder %s20, 0
      %p166 = por %p164, %p165
      %p167 = scmp.ne.s32.totalorder %s156, %s159
      %p168 = scmp.eq.s32.totalorder %s25, 1
      %p169 = por %p167, %p168
      %p170 = scmp.ne.s32.totalorder %s159, %s160
      %p171 = scmp.eq.s32.totalorder %s25, 0
      %p172 = por %p170, %p171
      %p173 = scmp.ne.s32.totalorder %s159, %s160
      %p174 = scmp.eq.s32.totalorder %s26, 1
      %p175 = por %p173, %p174
      %p177 = scmp.ne.s32.totalorder %s160, %s176
      %p178 = scmp.eq.s32.totalorder %s26, 0
      %p179 = por %p177, %p178
      %p180 = scmp.le.s32.totalorder 1, %s20
      %p181 = scmp.lt.s32.totalorder %s20, 3
      %p182 = pnand %p180, %p181
      %p183 = pneg %p182
      // Predicated region
      $region9: #{tpu_custom_call.1} parent=5 // pred_check
        _
      $region10: #{tpu_custom_call.1} parent=5 // pred_check_branch
        %185 = sbr.rel (%p182) target = $region12
      $region11: #{tpu_custom_call.1} parent=5 // pred_region
        %s186 = ssub.s32 %s20, 1
        // Predicated region
        $region13: #{tpu_custom_call.1} parent=11 // pred_check
          %p187 = pneg %p53
        $region14: #{tpu_custom_call.1} parent=11 // pred_check_branch
          %189 = sbr.rel (%p187) target = $region16
        $region15: #{tpu_custom_call.1} parent=11 // pred_region
          %s191 = ssub.s32 16, 16
          %192 = vsyncadd [#allocation5], %s191
          %195 = dma.hbm_to_smem %s0, 16, [#allocation2], [#allocation5]
        $region16: #{tpu_custom_call.1} parent=11 // pred_fallthru
          _
        // Predicated region
        $region17: #{tpu_custom_call.1} parent=11 // pred_check
          %p196 = pneg %p74
        $region18: #{tpu_custom_call.1} parent=11 // pred_check_branch
          %198 = sbr.rel (%p196) target = $region20
        $region19: #{tpu_custom_call.1} parent=11 // pred_region
          %s200 = ssub.s32 16, 16
          %201 = vsyncadd [#allocation6], %s200
          %s203 = sshll.u32 %s1, 4
          %s204 = int_to_ptr.vmem [resolvable:$true] %s203
          %206 = dma.vmem_to_smem %s204, 16, [#allocation7], [#allocation6]
        $region20: #{tpu_custom_call.1} parent=11 // pred_fallthru
          _
        // Predicated region
        $region21: #{tpu_custom_call.1} parent=11 // pred_check
          %p207 = pneg %p95
        $region22: #{tpu_custom_call.1} parent=11 // pred_check_branch
          %209 = sbr.rel (%p207) target = $region24
        $region23: #{tpu_custom_call.1} parent=11 // pred_region
          %s211 = ssub.s32 16, 16
          %212 = vsyncadd [#allocation9], %s211
          %s214 = sshll.u32 %s2, 4
          %s215 = int_to_ptr.vmem [resolvable:$true] %s214
          %217 = dma.vmem_to_smem %s215, 16, [#allocation8], [#allocation9]
        $region24: #{tpu_custom_call.1} parent=11 // pred_fallthru
          _
        // Predicated region
        $region25: #{tpu_custom_call.1} parent=11 // pred_check
          %p218 = pneg %p116
        $region26: #{tpu_custom_call.1} parent=11 // pred_check_branch
          %220 = sbr.rel (%p218) target = $region28
        $region27: #{tpu_custom_call.1} parent=11 // pred_region
          %s222 = ssub.s32 16, 16
          %223 = vsyncadd [#allocation9], %s222
          %s225 = sshll.u32 %s3, 4
          %s226 = int_to_ptr.vmem [resolvable:$true] %s225
          %228 = dma.vmem_to_smem %s226, 16, [#allocation10], [#allocation9]
        $region28: #{tpu_custom_call.1} parent=11 // pred_fallthru
          _
      $region12: #{tpu_custom_call.1} parent=5 // pred_fallthru
        _
      %p229 = scmp.lt.s32.totalorder %s20, 2
      // Predicated region
      $region29: #{tpu_custom_call.1} parent=5 // pred_check
        %p230 = pneg %p229
      $region30: #{tpu_custom_call.1} parent=5 // pred_check_branch
        %232 = sbr.rel (%p230) target = $region32
      $region31: #{tpu_custom_call.1} parent=5 // pred_region
        // Predicated region
        $region33: #{tpu_custom_call.1} parent=31 // pred_check
          %p233 = pneg %p138
        $region34: #{tpu_custom_call.1} parent=31 // pred_check_branch
          %235 = sbr.rel (%p233) target = $region36
        $region35: #{tpu_custom_call.1} parent=31 // pred_region
          %s236 = sand.u32 %s128, 1
          %s237 = scalar_lea.sflag [#allocation3], %s236
          %s238 = sand.u32 %s128, 1
          %s239 = smul.addr %s238, 16
          %s240 = scalar_lea.vmem [#allocation11], %s239
          %s242 = ssub.s32 256, 256
          %243 = vsyncadd %s237, %s242
          %s244 = smul.addr %s27, 4
          %s245 = sadd.s32 %s28, %s244
          %s246 = smul.addr %s245, 64
          %s247 = scalar_lea.hbm %s4, %s246
          %s248 = sshll.u32 %s240, 4
          %s249 = int_to_ptr.vmem [resolvable:$true] %s248
          %254 = dma.hbm_to_vmem [thread:$0]  %s247, 256, %s249, %s237, 64, 64, 4
        $region36: #{tpu_custom_call.1} parent=31 // pred_fallthru
          _
      $region32: #{tpu_custom_call.1} parent=5 // pred_fallthru
        _
      %p255 = scmp.le.s32.totalorder 1, %s20
      %p256 = scmp.lt.s32.totalorder %s20, 3
      %p257 = pnand %p255, %p256
      %p258 = pneg %p257
      // Predicated region
      $region37: #{tpu_custom_call.1} parent=5 // pred_check
        _
      $region38: #{tpu_custom_call.1} parent=5 // pred_check_branch
        %260 = sbr.rel (%p257) target = $region40
      $region39: #{tpu_custom_call.1} parent=5 // pred_region
        %s261 = ssub.s32 %s20, 1
        // Predicated region
        $region41: #{tpu_custom_call.1} parent=39 // pred_check
          %p262 = pneg %p53
        $region42: #{tpu_custom_call.1} parent=39 // pred_check_branch
          %264 = sbr.rel (%p262) target = $region44
        $region43: #{tpu_custom_call.1} parent=39 // pred_region
          %265 = dma.done [#allocation5], 16
        $region44: #{tpu_custom_call.1} parent=39 // pred_fallthru
          _
        // Predicated region
        $region45: #{tpu_custom_call.1} parent=39 // pred_check
          %p266 = pneg %p74
        $region46: #{tpu_custom_call.1} parent=39 // pred_check_branch
          %268 = sbr.rel (%p266) target = $region48
        $region47: #{tpu_custom_call.1} parent=39 // pred_region
          %269 = dma.done [#allocation6], 16
        $region48: #{tpu_custom_call.1} parent=39 // pred_fallthru
          _
        // Predicated region
        $region49: #{tpu_custom_call.1} parent=39 // pred_check
          %p270 = pneg %p95
        $region50: #{tpu_custom_call.1} parent=39 // pred_check_branch
          %272 = sbr.rel (%p270) target = $region52
        $region51: #{tpu_custom_call.1} parent=39 // pred_region
          %273 = dma.done [#allocation9], 16
        $region52: #{tpu_custom_call.1} parent=39 // pred_fallthru
          _
        // Predicated region
        $region53: #{tpu_custom_call.1} parent=39 // pred_check
          %p274 = pneg %p116
        $region54: #{tpu_custom_call.1} parent=39 // pred_check_branch
          %276 = sbr.rel (%p274) target = $region56
        $region55: #{tpu_custom_call.1} parent=39 // pred_region
          %277 = dma.done [#allocation9], 16
        $region56: #{tpu_custom_call.1} parent=39 // pred_fallthru
          _
        %s278 = sand.u32 %s131, 1
        %s279 = scalar_lea.sflag [#allocation3], %s278
        %s280 = sand.u32 %s131, 1
        %s281 = smul.addr %s280, 16
        %s282 = scalar_lea.vmem [#allocation11], %s281
        // Predicated region
        $region57: #{tpu_custom_call.1} parent=39 // pred_check
          %p283 = pneg %p144
        $region58: #{tpu_custom_call.1} parent=39 // pred_check_branch
          %285 = sbr.rel (%p283) target = $region60
        $region59: #{tpu_custom_call.1} parent=39 // pred_region
          %286 = dma.done %s279, 256
        $region60: #{tpu_custom_call.1} parent=39 // pred_fallthru
          _
        %287 = sfence
        %p288 = pneg %p53
        %p289 = pneg %p50
        %p290 = pneg %p74
        %p291 = pneg %p71
        %p292 = pneg %p95
        %p293 = pneg %p92
        %p294 = pneg %p116
        %p295 = pneg %p113
        %s296 = sand.u32 %s131, 1
        %s297 = scalar_lea.sflag [#allocation3], %s296
        %s298 = sand.u32 %s131, 1
        %s299 = smul.addr %s298, 16
        %s300 = scalar_lea.vmem [#allocation11], %s299
        %p301 = pneg %p144
        %p302 = pneg %p141
        %p303 = pneg %p172
        %p304 = pneg %p169
        %s305 = sand.u32 %s159, 1
        %s306 = scalar_lea.sflag [#allocation4], %s305
        %s307 = sand.u32 %s159, 1
        %s308 = smul.addr %s307, 16
        %s309 = scalar_lea.vmem [#allocation12], %s308
        %v310 = vld [vmem:[%s282] sm:$0xf]
        %s311 = scalar_lea.vmem %s282, 4 [#allocation11]
        %v312 = vld [vmem:[%s311] sm:$0xf]
        %s313 = scalar_lea.vmem %s282, 8 [#allocation11]
        %v314 = vld [vmem:[%s313] sm:$0xf]
        %s315 = scalar_lea.vmem %s282, 12 [#allocation11]
        %v316 = vld [vmem:[%s315] sm:$0xf]
        %s317 = sld [smem:[#allocation7]]
        %s318 = sld [smem:[#allocation2]]
        %v319 = vstv %s318
        %v320 = vmul.f32 %v319, %v310
        %v321 = vstv %s317
        %v322 = vadd.f32 %v321, %v320
        %s323 = sld [smem:[#allocation2 + $0x1]]
        %v324 = vstv %s323
        %v325 = vmul.f32 %v324, %v312
        %v326 = vadd.f32 %v322, %v325
        %s327 = sld [smem:[#allocation2 + $0x2]]
        %v328 = vstv %s327
        %v329 = vmul.f32 %v328, %v314
        %v330 = vadd.f32 %v326, %v329
        %s331 = sld [smem:[#allocation2 + $0x3]]
        %v332 = vstv %s331
        %v333 = vmul.f32 %v332, %v316
        %v334 = vadd.f32 %v330, %v333
        %v335 = vadd.f32 %v310, %v334
        %s336 = sld [smem:[#allocation7 + $0x1]]
        %s337 = sld [smem:[#allocation2 + $0x4]]
        %v338 = vstv %s337
        %v339 = vmul.f32 %v338, %v310
        %v340 = vstv %s336
        %v341 = vadd.f32 %v340, %v339
        %s342 = sld [smem:[#allocation2 + $0x5]]
        %v343 = vstv %s342
        %v344 = vmul.f32 %v343, %v312
        %v345 = vadd.f32 %v341, %v344
        %s346 = sld [smem:[#allocation2 + $0x6]]
        %v347 = vstv %s346
        %v348 = vmul.f32 %v347, %v314
        %v349 = vadd.f32 %v345, %v348
        %s350 = sld [smem:[#allocation2 + $0x7]]
        %v351 = vstv %s350
        %v352 = vmul.f32 %v351, %v316
        %v353 = vadd.f32 %v349, %v352
        %v354 = vadd.f32 %v312, %v353
        %s355 = sld [smem:[#allocation7 + $0x2]]
        %s356 = sld [smem:[#allocation2 + $0x8]]
        %v357 = vstv %s356
        %v358 = vmul.f32 %v357, %v310
        %v359 = vstv %s355
        %v360 = vadd.f32 %v359, %v358
        %s361 = sld [smem:[#allocation2 + $0x9]]
        %v362 = vstv %s361
        %v363 = vmul.f32 %v362, %v312
        %v364 = vadd.f32 %v360, %v363
        %s365 = sld [smem:[#allocation2 + $0xa]]
        %v366 = vstv %s365
        %v367 = vmul.f32 %v366, %v314
        %v368 = vadd.f32 %v364, %v367
        %s369 = sld [smem:[#allocation2 + $0xb]]
        %v370 = vstv %s369
        %v371 = vmul.f32 %v370, %v316
        %v372 = vadd.f32 %v368, %v371
        %v373 = vadd.f32 %v314, %v372
        %s374 = sld [smem:[#allocation7 + $0x3]]
        %s375 = sld [smem:[#allocation2 + $0xc]]
        %v376 = vstv %s375
        %v377 = vmul.f32 %v376, %v310
        %v378 = vstv %s374
        %v379 = vadd.f32 %v378, %v377
        %s380 = sld [smem:[#allocation2 + $0xd]]
        %v381 = vstv %s380
        %v382 = vmul.f32 %v381, %v312
        %v383 = vadd.f32 %v379, %v382
        %s384 = sld [smem:[#allocation2 + $0xe]]
        %v385 = vstv %s384
        %v386 = vmul.f32 %v385, %v314
        %v387 = vadd.f32 %v383, %v386
        %s388 = sld [smem:[#allocation2 + $0xf]]
        %v389 = vstv %s388
        %v390 = vmul.f32 %v389, %v316
        %v391 = vadd.f32 %v387, %v390
        %v392 = vadd.f32 %v316, %v391
        %s393 = sld [smem:[#allocation7 + $0x4]]
        %s394 = sld [smem:[#allocation2 + $0x10]]
        %v395 = vstv %s394
        %v396 = vmul.f32 %v395, %v335
        %v397 = vstv %s393
        %v398 = vadd.f32 %v397, %v396
        %s399 = sld [smem:[#allocation2 + $0x11]]
        %v400 = vstv %s399
        %v401 = vmul.f32 %v400, %v354
        %v402 = vadd.f32 %v398, %v401
        %s403 = sld [smem:[#allocation2 + $0x12]]
        %v404 = vstv %s403
        %v405 = vmul.f32 %v404, %v373
        %v406 = vadd.f32 %v402, %v405
        %s407 = sld [smem:[#allocation2 + $0x13]]
        %v408 = vstv %s407
        %v409 = vmul.f32 %v408, %v392
        %v410 = vadd.f32 %v406, %v409
        %v411 = vadd.f32 %v335, %v410
        %s412 = sld [smem:[#allocation7 + $0x5]]
        %s413 = sld [smem:[#allocation2 + $0x14]]
        %v414 = vstv %s413
        %v415 = vmul.f32 %v414, %v335
        %v416 = vstv %s412
        %v417 = vadd.f32 %v416, %v415
        %s418 = sld [smem:[#allocation2 + $0x15]]
        %v419 = vstv %s418
        %v420 = vmul.f32 %v419, %v354
        %v421 = vadd.f32 %v417, %v420
        %s422 = sld [smem:[#allocation2 + $0x16]]
        %v423 = vstv %s422
        %v424 = vmul.f32 %v423, %v373
        %v425 = vadd.f32 %v421, %v424
        %s426 = sld [smem:[#allocation2 + $0x17]]
        %v427 = vstv %s426
        %v428 = vmul.f32 %v427, %v392
        %v429 = vadd.f32 %v425, %v428
        %v430 = vadd.f32 %v354, %v429
        %s431 = sld [smem:[#allocation7 + $0x6]]
        %s432 = sld [smem:[#allocation2 + $0x18]]
        %v433 = vstv %s432
        %v434 = vmul.f32 %v433, %v335
        %v435 = vstv %s431
        %v436 = vadd.f32 %v435, %v434
        %s437 = sld [smem:[#allocation2 + $0x19]]
        %v438 = vstv %s437
        %v439 = vmul.f32 %v438, %v354
        %v440 = vadd.f32 %v436, %v439
        %s441 = sld [smem:[#allocation2 + $0x1a]]
        %v442 = vstv %s441
        %v443 = vmul.f32 %v442, %v373
        %v444 = vadd.f32 %v440, %v443
        %s445 = sld [smem:[#allocation2 + $0x1b]]
        %v446 = vstv %s445
        %v447 = vmul.f32 %v446, %v392
        %v448 = vadd.f32 %v444, %v447
        %v449 = vadd.f32 %v373, %v448
        %s450 = sld [smem:[#allocation7 + $0x7]]
        %s451 = sld [smem:[#allocation2 + $0x1c]]
        %v452 = vstv %s451
        %v453 = vmul.f32 %v452, %v335
        %v454 = vstv %s450
        %v455 = vadd.f32 %v454, %v453
        %s456 = sld [smem:[#allocation2 + $0x1d]]
        %v457 = vstv %s456
        %v458 = vmul.f32 %v457, %v354
        %v459 = vadd.f32 %v455, %v458
        %s460 = sld [smem:[#allocation2 + $0x1e]]
        %v461 = vstv %s460
        %v462 = vmul.f32 %v461, %v373
        %v463 = vadd.f32 %v459, %v462
        %s464 = sld [smem:[#allocation2 + $0x1f]]
        %v465 = vstv %s464
        %v466 = vmul.f32 %v465, %v392
        %v467 = vadd.f32 %v463, %v466
        %v468 = vadd.f32 %v392, %v467
        %s469 = sld [smem:[#allocation10]]
        %s470 = sld [smem:[#allocation8]]
        %v471 = vstv %s470
        %v472 = vmul.f32 %v471, %v411
        %v473 = vstv %s469
        %v474 = vadd.f32 %v473, %v472
        %s475 = sld [smem:[#allocation8 + $0x4]]
        %v476 = vstv %s475
        %v477 = vmul.f32 %v476, %v310
        %v478 = vadd.f32 %v474, %v477
        %s479 = sld [smem:[#allocation8 + $0x1]]
        %v480 = vstv %s479
        %v481 = vmul.f32 %v480, %v430
        %v482 = vadd.f32 %v478, %v481
        %s483 = sld [smem:[#allocation8 + $0x5]]
        %v484 = vstv %s483
        %v485 = vmul.f32 %v484, %v312
        %v486 = vadd.f32 %v482, %v485
        %s487 = sld [smem:[#allocation8 + $0x2]]
        %v488 = vstv %s487
        %v489 = vmul.f32 %v488, %v449
        %v490 = vadd.f32 %v486, %v489
        %s491 = sld [smem:[#allocation8 + $0x6]]
        %v492 = vstv %s491
        %v493 = vmul.f32 %v492, %v314
        %v494 = vadd.f32 %v490, %v493
        %s495 = sld [smem:[#allocation8 + $0x3]]
        %v496 = vstv %s495
        %v497 = vmul.f32 %v496, %v468
        %v498 = vadd.f32 %v494, %v497
        %s499 = sld [smem:[#allocation8 + $0x7]]
        %v500 = vstv %s499
        %v501 = vmul.f32 %v500, %v316
        %v502 = vadd.f32 %v498, %v501
        %503 = vst [vmem:[%s309] sm:$0xf] %v502
        %s504 = sld [smem:[#allocation10 + $0x1]]
        %s505 = sld [smem:[#allocation8 + $0x8]]
        %v506 = vstv %s505
        %v507 = vmul.f32 %v506, %v411
        %v508 = vstv %s504
        %v509 = vadd.f32 %v508, %v507
        %s510 = sld [smem:[#allocation8 + $0xc]]
        %v511 = vld [vmem:[%s282] sm:$0xf]
        %v512 = vstv %s510
        %v513 = vmul.f32 %v512, %v511
        %v514 = vadd.f32 %v509, %v513
        %s515 = sld [smem:[#allocation8 + $0x9]]
        %v516 = vstv %s515
        %v517 = vmul.f32 %v516, %v430
        %v518 = vadd.f32 %v514, %v517
        %s519 = sld [smem:[#allocation8 + $0xd]]
        %v520 = vld [vmem:[%s311] sm:$0xf]
        %v521 = vstv %s519
        %v522 = vmul.f32 %v521, %v520
        %v523 = vadd.f32 %v518, %v522
        %s524 = sld [smem:[#allocation8 + $0xa]]
        %v525 = vstv %s524
        %v526 = vmul.f32 %v525, %v449
        %v527 = vadd.f32 %v523, %v526
        %s528 = sld [smem:[#allocation8 + $0xe]]
        %v529 = vld [vmem:[%s313] sm:$0xf]
        %v530 = vstv %s528
        %v531 = vmul.f32 %v530, %v529
        %v532 = vadd.f32 %v527, %v531
        %s533 = sld [smem:[#allocation8 + $0xb]]
        %v534 = vstv %s533
        %v535 = vmul.f32 %v534, %v468
        %v536 = vadd.f32 %v532, %v535
        %s537 = sld [smem:[#allocation8 + $0xf]]
        %v538 = vld [vmem:[%s315] sm:$0xf]
        %v539 = vstv %s537
        %v540 = vmul.f32 %v539, %v538
        %v541 = vadd.f32 %v536, %v540
        %s542 = scalar_lea.vmem %s309, 4 [#allocation12]
        %543 = vst [vmem:[%s542] sm:$0xf] %v541
        %s544 = sld [smem:[#allocation10 + $0x2]]
        %s545 = sld [smem:[#allocation8 + $0x10]]
        %v546 = vstv %s545
        %v547 = vmul.f32 %v546, %v411
        %v548 = vstv %s544
        %v549 = vadd.f32 %v548, %v547
        %s550 = sld [smem:[#allocation8 + $0x14]]
        %v551 = vld [vmem:[%s282] sm:$0xf]
        %v552 = vstv %s550
        %v553 = vmul.f32 %v552, %v551
        %v554 = vadd.f32 %v549, %v553
        %s555 = sld [smem:[#allocation8 + $0x11]]
        %v556 = vstv %s555
        %v557 = vmul.f32 %v556, %v430
        %v558 = vadd.f32 %v554, %v557
        %s559 = sld [smem:[#allocation8 + $0x15]]
        %v560 = vld [vmem:[%s311] sm:$0xf]
        %v561 = vstv %s559
        %v562 = vmul.f32 %v561, %v560
        %v563 = vadd.f32 %v558, %v562
        %s564 = sld [smem:[#allocation8 + $0x12]]
        %v565 = vstv %s564
        %v566 = vmul.f32 %v565, %v449
        %v567 = vadd.f32 %v563, %v566
        %s568 = sld [smem:[#allocation8 + $0x16]]
        %v569 = vld [vmem:[%s313] sm:$0xf]
        %v570 = vstv %s568
        %v571 = vmul.f32 %v570, %v569
        %v572 = vadd.f32 %v567, %v571
        %s573 = sld [smem:[#allocation8 + $0x13]]
        %v574 = vstv %s573
        %v575 = vmul.f32 %v574, %v468
        %v576 = vadd.f32 %v572, %v575
        %s577 = sld [smem:[#allocation8 + $0x17]]
        %v578 = vld [vmem:[%s315] sm:$0xf]
        %v579 = vstv %s577
        %v580 = vmul.f32 %v579, %v578
        %v581 = vadd.f32 %v576, %v580
        %s582 = scalar_lea.vmem %s309, 8 [#allocation12]
        %583 = vst [vmem:[%s582] sm:$0xf] %v581
        %s584 = sld [smem:[#allocation10 + $0x3]]
        %s585 = sld [smem:[#allocation8 + $0x18]]
        %v586 = vstv %s585
        %v587 = vmul.f32 %v586, %v411
        %v588 = vstv %s584
        %v589 = vadd.f32 %v588, %v587
        %s590 = sld [smem:[#allocation8 + $0x1c]]
        %v591 = vld [vmem:[%s282] sm:$0xf]
        %v592 = vstv %s590
        %v593 = vmul.f32 %v592, %v591
        %v594 = vadd.f32 %v589, %v593
        %s595 = sld [smem:[#allocation8 + $0x19]]
        %v596 = vstv %s595
        %v597 = vmul.f32 %v596, %v430
        %v598 = vadd.f32 %v594, %v597
        %s599 = sld [smem:[#allocation8 + $0x1d]]
        %v600 = vld [vmem:[%s311] sm:$0xf]
        %v601 = vstv %s599
        %v602 = vmul.f32 %v601, %v600
        %v603 = vadd.f32 %v598, %v602
        %s604 = sld [smem:[#allocation8 + $0x1a]]
        %v605 = vstv %s604
        %v606 = vmul.f32 %v605, %v449
        %v607 = vadd.f32 %v603, %v606
        %s608 = sld [smem:[#allocation8 + $0x1e]]
        %v609 = vld [vmem:[%s313] sm:$0xf]
        %v610 = vstv %s608
        %v611 = vmul.f32 %v610, %v609
        %v612 = vadd.f32 %v607, %v611
        %s613 = sld [smem:[#allocation8 + $0x1b]]
        %v614 = vstv %s613
        %v615 = vmul.f32 %v614, %v468
        %v616 = vadd.f32 %v612, %v615
        %s617 = sld [smem:[#allocation8 + $0x1f]]
        %v618 = vld [vmem:[%s315] sm:$0xf]
        %v619 = vstv %s617
        %v620 = vmul.f32 %v619, %v618
        %v621 = vadd.f32 %v616, %v620
        %s622 = scalar_lea.vmem %s309, 12 [#allocation12]
        %623 = vst [vmem:[%s622] sm:$0xf] %v621
        %s624 = sand.u32 %s159, 1
        %s625 = scalar_lea.sflag [#allocation4], %s624
        %s626 = sand.u32 %s159, 1
        %s627 = smul.addr %s626, 16
        %s628 = scalar_lea.vmem [#allocation12], %s627
        // Predicated region
        $region61: #{tpu_custom_call.1} parent=39 // pred_check
          %p629 = pneg %p169
        $region62: #{tpu_custom_call.1} parent=39 // pred_check_branch
          %631 = sbr.rel (%p629) target = $region64
        $region63: #{tpu_custom_call.1} parent=39 // pred_region
          %s633 = ssub.s32 256, 256
          %634 = vsyncadd %s625, %s633
          %s635 = smul.addr %s29, 4
          %s636 = sadd.s32 %s30, %s635
          %s637 = smul.addr %s636, 64
          %s638 = scalar_lea.hbm %s5, %s637
          %s639 = sshll.u32 %s628, 4
          %s640 = int_to_ptr.vmem [resolvable:$true] %s639
          %645 = dma.vmem_to_hbm [thread:$0]  %s640, 256, %s638, %s625, 64, 64, 4
        $region64: #{tpu_custom_call.1} parent=39 // pred_fallthru
          _
      $region40: #{tpu_custom_call.1} parent=5 // pred_fallthru
        _
      %p646 = scmp.le.s32.totalorder 2, %s20
      // Predicated region
      $region65: #{tpu_custom_call.1} parent=5 // pred_check
        %p647 = pneg %p646
      $region66: #{tpu_custom_call.1} parent=5 // pred_check_branch
        %649 = sbr.rel (%p647) target = $region68
      $region67: #{tpu_custom_call.1} parent=5 // pred_region
        %s650 = ssub.s32 %s20, 2
        // Predicated region
        $region69: #{tpu_custom_call.1} parent=67 // pred_check
          %p651 = pneg %p175
        $region70: #{tpu_custom_call.1} parent=67 // pred_check_branch
          %653 = sbr.rel (%p651) target = $region72
        $region71: #{tpu_custom_call.1} parent=67 // pred_region
          %s654 = sand.u32 %s160, 1
          %s655 = scalar_lea.sflag [#allocation4], %s654
          %s656 = sand.u32 %s160, 1
          %s657 = smul.addr %s656, 16
          %s658 = scalar_lea.vmem [#allocation12], %s657
          %659 = dma.done %s655, 256
        $region72: #{tpu_custom_call.1} parent=67 // pred_fallthru
          _
      $region68: #{tpu_custom_call.1} parent=5 // pred_fallthru
        _
    $region6: #{tpu_custom_call.1} parent=1 // loop_footer
      %s24 = sadd.s32 1, %s20
    $region7: #{tpu_custom_call.1} parent=1 // loop_footer_branch
      %19 = sbr.rel target = $region3
    $region8: #{tpu_custom_call.1} parent=1 // loop_exit
      _
    %660 = vsyncpa [#allocation3], 1
    %s661 = scalar_lea.sflag [#allocation3], 1
    %662 = vsyncpa %s661, 1
    %663 = vsyncpa [#allocation4], 1
    %s664 = scalar_lea.sflag [#allocation4], 1
    %665 = vsyncpa %s664, 1
    %666 = vsyncpa [#allocation5], 1
    %s667 = scalar_lea.sflag [#allocation5], 1
    %668 = vsyncpa %s667, 1
    %669 = vsyncpa [#allocation6], 1
    %s670 = scalar_lea.sflag [#allocation6], 1
    %671 = vsyncpa %s670, 1
    %672 = vsyncpa [#allocation9], 1

</llo_original>
